<compile_context>
chip_gen: v5e
topology: v5e:2x2
jax: 0.10.0
libtpu: 0.0.40
codegen_flags: <defaults>
</compile_context>

<pallas_src>
import math

import jax
import jax.numpy as jnp
from jax.experimental import pallas as pl
from jax.experimental.pallas import tpu as pltpu

# ----------------------------- module config --------------------------------
INPUT_DIM = 16
OUTPUT_DIM = 8
COMPLEXITY = 5
INTERNAL_DIM = max(OUTPUT_DIM, COMPLEXITY, INPUT_DIM // 2 + 1)  # = 9
NUM_BASE_FUNCS = 7
LN_EPS = 1e-5

BATCH = 16            # small test batch (matches the PyTorch usage)
LARGE_BATCH = 16384   # exercises the lane-tiled "parallel" grid path

# lane-tile policy for the large-batch grid path
MAX_LANE_TILE = 16384     # ~1 MiB x-tile / 0.5 MiB out-tile (f32) per buffer
MIN_LANE_TILE = 512
TARGET_GRID_STEPS = 8     # keep both v7x TensorCores fed (>= 4 steps each)
SMALL_BATCH_MAX = 2048    # below this: single grid-free invocation
VMEM_LIMIT_BYTES = 32 * 1024 * 1024  # raise v5e's 16 MiB default; safe on v6e/v7x

# packed-parameter column offsets inside p_in : (INTERNAL_DIM, P_IN_COLS)
_OFF_BIN = INPUT_DIM                 # bias of input Linear
_OFF_LNW = INPUT_DIM + 1             # LayerNorm weight
_OFF_LNB = INPUT_DIM + 2             # LayerNorm bias
_OFF_COEF = INPUT_DIM + 3            # coeffs    (COMPLEXITY columns)
_OFF_EXP = _OFF_COEF + COMPLEXITY    # exponents (COMPLEXITY columns)
P_IN_COLS = _OFF_EXP + COMPLEXITY    # = 29
P_OUT_COLS = INTERNAL_DIM + 1        # W_out^T columns + output bias = 10


def _base_func(idx, t, *, fast_sigmoid=False):
    """Matches DynamicMathUnit.base_funcs[idx % 7]. Static python dispatch.

    fast_sigmoid=True rewrites sigmoid(t) as 0.5*(1 + tanh(0.5*t)) so the
    SiLU-style terms cost a single EUP transcendental instead of exp+recip.
    """
    idx = idx % NUM_BASE_FUNCS
    if fast_sigmoid:
        sigmoid = lambda v: 0.5 * (1.0 + jnp.tanh(0.5 * v))
    else:
        sigmoid = jax.nn.sigmoid
    if idx == 0:
        return jnp.sin(t)
    if idx == 1:
        return jnp.cos(t)
    if idx == 2:
        return jnp.tanh(t)
    if idx == 3:  # SiLU
        return t * sigmoid(t)
    if idx == 4:  # ReLU6
        return jnp.clip(t, 0.0, 6.0)
    if idx == 5:  # sigmoid(x) * x
        return sigmoid(t) * t
    # tanh-approx GELU
    c = math.sqrt(2.0 / math.pi)
    return 0.5 * t * (1.0 + jnp.tanh(c * (t + 0.044715 * t * t * t)))


def _nan_to_num_torch(v):
    """torch.nan_to_num(v, nan=0.0, posinf=1e4, neginf=-1e4) — elementwise VPU."""
    v = jnp.where(v != v, 0.0, v)            # NaN  -> 0
    v = jnp.where(v == jnp.inf, 1.0e4, v)    # +inf -> 1e4
    v = jnp.where(v == -jnp.inf, -1.0e4, v)  # -inf -> -1e4
    return v


# ------------------------------- kernel -------------------------------------
def dmu_kernel(x_ref, p_in_ref, p_out_ref, o_ref):
    # whole-block loads, hoisted once (params are a few hundred bytes each)
    x = x_ref[...]          # (Bt, INPUT_DIM)  -- natural layout, batch on sublanes
    p_in = p_in_ref[...]    # (INTERNAL_DIM, P_IN_COLS)
    p_out = p_out_ref[...]  # (OUTPUT_DIM, P_OUT_COLS)

    w_in_t = p_in[:, :INPUT_DIM]                        # (INTERNAL_DIM, INPUT_DIM)
    b_in = p_in[:, _OFF_BIN:_OFF_BIN + 1]               # (INTERNAL_DIM, 1)
    ln_w = p_in[:, _OFF_LNW:_OFF_LNW + 1]
    ln_b = p_in[:, _OFF_LNB:_OFF_LNB + 1]
    coeffs = p_in[:, _OFF_COEF:_OFF_COEF + COMPLEXITY]  # (INTERNAL_DIM, COMPLEXITY)
    exps = p_in[:, _OFF_EXP:_OFF_EXP + COMPLEXITY]      # (INTERNAL_DIM, COMPLEXITY)

    # Input Linear: contract both feature axes directly (no HBM transpose of x).
    # Result has batch on the LANE axis for all downstream elementwise work.
    # (tiny K=16 contraction; MXU is otherwise idle -> free filler.)
    h = jax.lax.dot_general(
        w_in_t, x,
        dimension_numbers=(((1,), (1,)), ((), ())),
        preferred_element_type=jnp.float32)             # (INTERNAL_DIM, Bt)
    h = h + b_in

    # LayerNorm over the feature (sublane) axis — two-pass, biased variance,
    # matching PyTorch nn.LayerNorm.
    mean = jnp.mean(h, axis=0, keepdims=True)            # (1, Bt)
    diff = h - mean
    var = jnp.mean(diff * diff, axis=0, keepdims=True)
    h = diff * jax.lax.rsqrt(var + LN_EPS)
    h = h * ln_w + ln_b

    # ReLU
    h = jnp.maximum(h, 0.0)

    # dynamic term sum (complexity is static -> unrolled); coeffs/exps were
    # loaded once above, only in-register column slices inside the loop.
    dyn = jnp.zeros_like(h)
    for i in range(COMPLEXITY):
        t = jnp.clip(h * exps[:, i:i + 1], -10.0, 10.0)
        term = coeffs[:, i:i + 1] * _base_func(i, t, fast_sigmoid=True)
        dyn = dyn + _nan_to_num_torch(term)

    # output Linear + clamp: (OUTPUT_DIM, INTERNAL_DIM) @ (INTERNAL_DIM, Bt)
    out = jnp.dot(p_out[:, :INTERNAL_DIM], dyn,
                  preferred_element_type=jnp.float32)
    out = out + p_out[:, INTERNAL_DIM:INTERNAL_DIM + 1]
    o_ref[...] = jnp.clip(out, -100.0, 100.0)            # lane-dense (8, Bt) store


# ------------------------------- wrapper -------------------------------------
def pack_params(p):
    """Pack the 8 natural parameters into 2 lane-layout arrays for the kernel."""
    p_in = jnp.concatenate(
        [p["w_in"].T,                       # (INTERNAL_DIM, INPUT_DIM)
         p["b_in"][:, None],
         p["ln_w"][:, None],
         p["ln_b"][:, None],
         p["coeffs"],                       # (INTERNAL_DIM, COMPLEXITY)
         p["exps"]], axis=1)                # -> (INTERNAL_DIM, P_IN_COLS)
    p_out = jnp.concatenate(
        [p["w_out"].T,                      # (OUTPUT_DIM, INTERNAL_DIM)
         p["b_out"][:, None]], axis=1)      # -> (OUTPUT_DIM, P_OUT_COLS)
    return p_in, p_out


def _choose_tile(batch):
    """Lane tile: multiple of 512, capped, keeping >= TARGET_GRID_STEPS steps."""
    t = (batch // TARGET_GRID_STEPS) // MIN_LANE_TILE * MIN_LANE_TILE
    return int(max(MIN_LANE_TILE, min(MAX_LANE_TILE, t)))


def dynamic_math_unit(x, p_in, p_out, *, batch_major_output=True):
    """x: (B, INPUT_DIM) -> (B, OUTPUT_DIM) (or (OUTPUT_DIM, B) if
    batch_major_output=False, which avoids the final XLA transpose for
    consumers that can use the lane-major form directly)."""
    B = x.shape[0]

    if B <= SMALL_BATCH_MAX:
        # Small batch: single grid-free invocation — pure fixed overhead,
        # everything fits trivially in VMEM, 3 DMA streams total.
        out_t = pl.pallas_call(
            dmu_kernel,
            out_shape=jax.ShapeDtypeStruct((OUTPUT_DIM, B), jnp.float32),
        )(x, p_in, p_out)
    else:
        # Large batch: lane-tiled grid over the batch axis, parameters
        # replicated.  pl.cdiv grid handles ragged B (Pallas clips the partial
        # last block; no cross-batch mixing exists in the math, so out-of-bounds
        # lanes cannot contaminate valid outputs).
        tile = _choose_tile(B)
        rep = lambda i: (0, 0)
        out_t = pl.pallas_call(
            dmu_kernel,
            out_shape=jax.ShapeDtypeStruct((OUTPUT_DIM, B), jnp.float32),
            grid_spec=pltpu.PrefetchScalarGridSpec(
                num_scalar_prefetch=0,
                grid=(pl.cdiv(B, tile),),
                in_specs=[
                    pl.BlockSpec((tile, INPUT_DIM), lambda i: (i, 0)),
                    pl.BlockSpec((INTERNAL_DIM, P_IN_COLS), rep),
                    pl.BlockSpec((OUTPUT_DIM, P_OUT_COLS), rep),
                ],
                out_specs=pl.BlockSpec((OUTPUT_DIM, tile), lambda i: (0, i)),
            ),
            compiler_params=pltpu.CompilerParams(
                dimension_semantics=("parallel",),
                vmem_limit_bytes=VMEM_LIMIT_BYTES),
        )(x, p_in, p_out)

    if batch_major_output:
        return jnp.transpose(out_t)   # (B, OUTPUT_DIM), matches the PyTorch module
    return out_t                      # (OUTPUT_DIM, B), no extra HBM pass


# ------------------------ deterministic parameter init -----------------------
def init_params(key):
    k_win, k_wout, k_coef, k_exp = jax.random.split(key, 4)

    # xavier_uniform for Linear weights
    a_in = math.sqrt(6.0 / (INPUT_DIM + INTERNAL_DIM))
    w_in = jax.random.uniform(k_win, (INPUT_DIM, INTERNAL_DIM),
                              jnp.float32, -a_in, a_in)
    a_out = math.sqrt(6.0 / (INTERNAL_DIM + OUTPUT_DIM))
    w_out = jax.random.uniform(k_wout, (INTERNAL_DIM, OUTPUT_DIM),
                               jnp.float32, -a_out, a_out)

    coeffs = jax.random.normal(k_coef, (INTERNAL_DIM, COMPLEXITY),
                               jnp.float32) * 0.05
    exps = jax.random.uniform(k_exp, (INTERNAL_DIM, COMPLEXITY),
                              jnp.float32) * 1.5 + 0.25

    return dict(
        w_in=w_in,                                   # (INPUT_DIM, INTERNAL_DIM)
        b_in=jnp.zeros((INTERNAL_DIM,), jnp.float32),
        ln_w=jnp.ones((INTERNAL_DIM,), jnp.float32),
        ln_b=jnp.zeros((INTERNAL_DIM,), jnp.float32),
        coeffs=coeffs,                               # (INTERNAL_DIM, COMPLEXITY)
        exps=exps,                                   # (INTERNAL_DIM, COMPLEXITY)
        w_out=w_out,                                 # (INTERNAL_DIM, OUTPUT_DIM)
        b_out=jnp.zeros((OUTPUT_DIM,), jnp.float32),
    )


# ----------------------------- pure-JAX reference ----------------------------
def reference(x, p):
    h = x @ p["w_in"] + p["b_in"][None, :]
    mean = jnp.mean(h, axis=-1, keepdims=True)
    var = jnp.mean((h - mean) ** 2, axis=-1, keepdims=True)
    h = (h - mean) / jnp.sqrt(var + LN_EPS) * p["ln_w"][None, :] + p["ln_b"][None, :]
    h = jnp.maximum(h, 0.0)
    dyn = jnp.zeros_like(h)
    for i in range(COMPLEXITY):
        t = jnp.clip(h * p["exps"][:, i][None, :], -10.0, 10.0)
        term = p["coeffs"][:, i][None, :] * _base_func(i, t)
        dyn = dyn + _nan_to_num_torch(term)
    out = dyn @ p["w_out"] + p["b_out"][None, :]
    return jnp.clip(out, -100.0, 100.0)


if __name__ == "__main__":
    key = jax.random.PRNGKey(0)
    k_x, k_p, k_x2 = jax.random.split(key, 3)
    params = init_params(k_p)
    p_in, p_out = pack_params(params)

    # --- small batch (the module's typical usage): grid-free path ------------
    x = jax.random.normal(k_x, (BATCH, INPUT_DIM), jnp.float32)
    out = jax.block_until_ready(dynamic_math_unit(x, p_in, p_out))
    ref = reference(x, params)
    assert out.shape == (BATCH, OUTPUT_DIM)
    # kernel uses tanh-form sigmoid + MXU f32 dots -> tiny numerical deltas;
    # 1e-4 tolerance covers it.
    assert jnp.allclose(out, ref, atol=1e-4, rtol=1e-4)

    # --- large batch: lane-tiled "parallel" grid path -------------------------
    xl = jax.random.normal(k_x2, (LARGE_BATCH, INPUT_DIM), jnp.float32)
    outl = jax.block_until_ready(dynamic_math_unit(xl, p_in, p_out))
    refl = reference(xl, params)
    assert outl.shape == (LARGE_BATCH, OUTPUT_DIM)
    assert jnp.allclose(outl, refl, atol=1e-4, rtol=1e-4)

    print("KERNEL_OK")
</pallas_src>

<mosaic_0001>
module attributes {stable_mosaic.version = 11 : i64} {
  func.func @dmu_kernel(%arg0: memref<16x16xf32, #tpu.memory_space<vmem>>, %arg1: memref<9x29xf32, #tpu.memory_space<vmem>>, %arg2: memref<8x10xf32, #tpu.memory_space<vmem>>, %arg3: memref<8x16xf32, #tpu.memory_space<vmem>>) attributes {dimension_semantics = [], scalar_prefetch = 0 : i64, scratch_operands = 0 : i64, tpu.core_type = #tpu.core_type<tc>} {
    %c0 = arith.constant 0 : index
    %c0_0 = arith.constant 0 : index
    %0 = vector.load %arg0[%c0, %c0_0] : memref<16x16xf32, #tpu.memory_space<vmem>>, vector<16x16xf32>
    %c0_1 = arith.constant 0 : index
    %c0_2 = arith.constant 0 : index
    %1 = vector.load %arg1[%c0_1, %c0_2] : memref<9x29xf32, #tpu.memory_space<vmem>>, vector<9x29xf32>
    %c0_3 = arith.constant 0 : index
    %c0_4 = arith.constant 0 : index
    %2 = vector.load %arg2[%c0_3, %c0_4] : memref<8x10xf32, #tpu.memory_space<vmem>>, vector<8x10xf32>
    %3 = vector.extract_strided_slice %1 {offsets = [0, 0], sizes = [9, 16], strides = [1, 1]} : vector<9x29xf32> to vector<9x16xf32>
    %4 = vector.extract_strided_slice %1 {offsets = [0, 16], sizes = [9, 1], strides = [1, 1]} : vector<9x29xf32> to vector<9x1xf32>
    %5 = vector.extract_strided_slice %1 {offsets = [0, 17], sizes = [9, 1], strides = [1, 1]} : vector<9x29xf32> to vector<9x1xf32>
    %6 = vector.extract_strided_slice %1 {offsets = [0, 18], sizes = [9, 1], strides = [1, 1]} : vector<9x29xf32> to vector<9x1xf32>
    %7 = vector.extract_strided_slice %1 {offsets = [0, 19], sizes = [9, 5], strides = [1, 1]} : vector<9x29xf32> to vector<9x5xf32>
    %8 = vector.extract_strided_slice %1 {offsets = [0, 24], sizes = [9, 5], strides = [1, 1]} : vector<9x29xf32> to vector<9x5xf32>
    %cst = arith.constant dense<0.000000e+00> : vector<9x16xf32>
    %9 = tpu.matmul %3, %0, %cst {dimension_numbers = #tpu.dot_dimension_numbers<[1], [1], [0], [0], [0, 0, 1, 0], [], []>} : vector<9x16xf32>, vector<16x16xf32>, vector<9x16xf32> -> vector<9x16xf32>
    %10 = vector.broadcast %4 : vector<9x1xf32> to vector<9x16xf32>
    %11 = arith.addf %9, %10 : vector<9x16xf32>
    %cst_5 = arith.constant dense<0.000000e+00> : vector<16xf32>
    %12 = vector.multi_reduction <add>, %11, %cst_5 [0] : vector<9x16xf32> to vector<16xf32>
    %13 = vector.shape_cast %12 : vector<16xf32> to vector<1x16xf32>
    %cst_6 = arith.constant 9.000000e+00 : f32
    %14 = vector.broadcast %cst_6 : f32 to vector<1x16xf32>
    %15 = arith.divf %13, %14 : vector<1x16xf32>
    %16 = vector.broadcast %15 : vector<1x16xf32> to vector<9x16xf32>
    %17 = arith.subf %11, %16 : vector<9x16xf32>
    %18 = arith.mulf %17, %17 : vector<9x16xf32>
    %cst_7 = arith.constant dense<0.000000e+00> : vector<16xf32>
    %19 = vector.multi_reduction <add>, %18, %cst_7 [0] : vector<9x16xf32> to vector<16xf32>
    %20 = vector.shape_cast %19 : vector<16xf32> to vector<1x16xf32>
    %cst_8 = arith.constant 9.000000e+00 : f32
    %21 = vector.broadcast %cst_8 : f32 to vector<1x16xf32>
    %22 = arith.divf %20, %21 : vector<1x16xf32>
    %cst_9 = arith.constant 9.99999974E-6 : f32
    %23 = vector.broadcast %cst_9 : f32 to vector<1x16xf32>
    %24 = arith.addf %22, %23 : vector<1x16xf32>
    %25 = math.rsqrt %24 : vector<1x16xf32>
    %26 = vector.broadcast %25 : vector<1x16xf32> to vector<9x16xf32>
    %27 = arith.mulf %17, %26 : vector<9x16xf32>
    %28 = vector.broadcast %5 : vector<9x1xf32> to vector<9x16xf32>
    %29 = arith.mulf %27, %28 : vector<9x16xf32>
    %30 = vector.broadcast %6 : vector<9x1xf32> to vector<9x16xf32>
    %31 = arith.addf %29, %30 : vector<9x16xf32>
    %cst_10 = arith.constant 0.000000e+00 : f32
    %32 = vector.broadcast %cst_10 : f32 to vector<9x16xf32>
    %33 = arith.maximumf %31, %32 : vector<9x16xf32>
    %cst_11 = arith.constant 0.000000e+00 : f32
    %34 = vector.broadcast %cst_11 : f32 to vector<9x16xf32>
    %35 = vector.extract_strided_slice %8 {offsets = [0, 0], sizes = [9, 1], strides = [1, 1]} : vector<9x5xf32> to vector<9x1xf32>
    %36 = vector.broadcast %35 : vector<9x1xf32> to vector<9x16xf32>
    %37 = arith.mulf %33, %36 : vector<9x16xf32>
    %cst_12 = arith.constant -1.000000e+01 : f32
    %cst_13 = arith.constant 1.000000e+01 : f32
    %38 = vector.broadcast %cst_12 : f32 to vector<9x16xf32>
    %39 = arith.maximumf %38, %37 : vector<9x16xf32>
    %40 = vector.broadcast %cst_13 : f32 to vector<9x16xf32>
    %41 = arith.minimumf %40, %39 : vector<9x16xf32>
    %42 = vector.extract_strided_slice %7 {offsets = [0, 0], sizes = [9, 1], strides = [1, 1]} : vector<9x5xf32> to vector<9x1xf32>
    %43 = math.sin %41 : vector<9x16xf32>
    %44 = vector.broadcast %42 : vector<9x1xf32> to vector<9x16xf32>
    %45 = arith.mulf %44, %43 : vector<9x16xf32>
    %46 = arith.cmpf one, %45, %45 : vector<9x16xf32>
    %cst_14 = arith.constant 0.000000e+00 : f32
    %47 = vector.broadcast %cst_14 : f32 to vector<9x16xf32>
    %48 = arith.select %46, %47, %45 : vector<9x16xi1>, vector<9x16xf32>
    %cst_15 = arith.constant 0x7F800000 : f32
    %49 = vector.broadcast %cst_15 : f32 to vector<9x16xf32>
    %50 = arith.cmpf oeq, %48, %49 : vector<9x16xf32>
    %cst_16 = arith.constant 1.000000e+04 : f32
    %51 = vector.broadcast %cst_16 : f32 to vector<9x16xf32>
    %52 = arith.select %50, %51, %48 : vector<9x16xi1>, vector<9x16xf32>
    %cst_17 = arith.constant 0xFF800000 : f32
    %53 = vector.broadcast %cst_17 : f32 to vector<9x16xf32>
    %54 = arith.cmpf oeq, %52, %53 : vector<9x16xf32>
    %cst_18 = arith.constant -1.000000e+04 : f32
    %55 = vector.broadcast %cst_18 : f32 to vector<9x16xf32>
    %56 = arith.select %54, %55, %52 : vector<9x16xi1>, vector<9x16xf32>
    %57 = arith.addf %34, %56 : vector<9x16xf32>
    %58 = vector.extract_strided_slice %8 {offsets = [0, 1], sizes = [9, 1], strides = [1, 1]} : vector<9x5xf32> to vector<9x1xf32>
    %59 = vector.broadcast %58 : vector<9x1xf32> to vector<9x16xf32>
    %60 = arith.mulf %33, %59 : vector<9x16xf32>
    %cst_19 = arith.constant -1.000000e+01 : f32
    %cst_20 = arith.constant 1.000000e+01 : f32
    %61 = vector.broadcast %cst_19 : f32 to vector<9x16xf32>
    %62 = arith.maximumf %61, %60 : vector<9x16xf32>
    %63 = vector.broadcast %cst_20 : f32 to vector<9x16xf32>
    %64 = arith.minimumf %63, %62 : vector<9x16xf32>
    %65 = vector.extract_strided_slice %7 {offsets = [0, 1], sizes = [9, 1], strides = [1, 1]} : vector<9x5xf32> to vector<9x1xf32>
    %66 = math.cos %64 : vector<9x16xf32>
    %67 = vector.broadcast %65 : vector<9x1xf32> to vector<9x16xf32>
    %68 = arith.mulf %67, %66 : vector<9x16xf32>
    %69 = arith.cmpf one, %68, %68 : vector<9x16xf32>
    %cst_21 = arith.constant 0.000000e+00 : f32
    %70 = vector.broadcast %cst_21 : f32 to vector<9x16xf32>
    %71 = arith.select %69, %70, %68 : vector<9x16xi1>, vector<9x16xf32>
    %cst_22 = arith.constant 0x7F800000 : f32
    %72 = vector.broadcast %cst_22 : f32 to vector<9x16xf32>
    %73 = arith.cmpf oeq, %71, %72 : vector<9x16xf32>
    %cst_23 = arith.constant 1.000000e+04 : f32
    %74 = vector.broadcast %cst_23 : f32 to vector<9x16xf32>
    %75 = arith.select %73, %74, %71 : vector<9x16xi1>, vector<9x16xf32>
    %cst_24 = arith.constant 0xFF800000 : f32
    %76 = vector.broadcast %cst_24 : f32 to vector<9x16xf32>
    %77 = arith.cmpf oeq, %75, %76 : vector<9x16xf32>
    %cst_25 = arith.constant -1.000000e+04 : f32
    %78 = vector.broadcast %cst_25 : f32 to vector<9x16xf32>
    %79 = arith.select %77, %78, %75 : vector<9x16xi1>, vector<9x16xf32>
    %80 = arith.addf %57, %79 : vector<9x16xf32>
    %81 = vector.extract_strided_slice %8 {offsets = [0, 2], sizes = [9, 1], strides = [1, 1]} : vector<9x5xf32> to vector<9x1xf32>
    %82 = vector.broadcast %81 : vector<9x1xf32> to vector<9x16xf32>
    %83 = arith.mulf %33, %82 : vector<9x16xf32>
    %cst_26 = arith.constant -1.000000e+01 : f32
    %cst_27 = arith.constant 1.000000e+01 : f32
    %84 = vector.broadcast %cst_26 : f32 to vector<9x16xf32>
    %85 = arith.maximumf %84, %83 : vector<9x16xf32>
    %86 = vector.broadcast %cst_27 : f32 to vector<9x16xf32>
    %87 = arith.minimumf %86, %85 : vector<9x16xf32>
    %88 = vector.extract_strided_slice %7 {offsets = [0, 2], sizes = [9, 1], strides = [1, 1]} : vector<9x5xf32> to vector<9x1xf32>
    %89 = math.tanh %87 : vector<9x16xf32>
    %90 = vector.broadcast %88 : vector<9x1xf32> to vector<9x16xf32>
    %91 = arith.mulf %90, %89 : vector<9x16xf32>
    %92 = arith.cmpf one, %91, %91 : vector<9x16xf32>
    %cst_28 = arith.constant 0.000000e+00 : f32
    %93 = vector.broadcast %cst_28 : f32 to vector<9x16xf32>
    %94 = arith.select %92, %93, %91 : vector<9x16xi1>, vector<9x16xf32>
    %cst_29 = arith.constant 0x7F800000 : f32
    %95 = vector.broadcast %cst_29 : f32 to vector<9x16xf32>
    %96 = arith.cmpf oeq, %94, %95 : vector<9x16xf32>
    %cst_30 = arith.constant 1.000000e+04 : f32
    %97 = vector.broadcast %cst_30 : f32 to vector<9x16xf32>
    %98 = arith.select %96, %97, %94 : vector<9x16xi1>, vector<9x16xf32>
    %cst_31 = arith.constant 0xFF800000 : f32
    %99 = vector.broadcast %cst_31 : f32 to vector<9x16xf32>
    %100 = arith.cmpf oeq, %98, %99 : vector<9x16xf32>
    %cst_32 = arith.constant -1.000000e+04 : f32
    %101 = vector.broadcast %cst_32 : f32 to vector<9x16xf32>
    %102 = arith.select %100, %101, %98 : vector<9x16xi1>, vector<9x16xf32>
    %103 = arith.addf %80, %102 : vector<9x16xf32>
    %104 = vector.extract_strided_slice %8 {offsets = [0, 3], sizes = [9, 1], strides = [1, 1]} : vector<9x5xf32> to vector<9x1xf32>
    %105 = vector.broadcast %104 : vector<9x1xf32> to vector<9x16xf32>
    %106 = arith.mulf %33, %105 : vector<9x16xf32>
    %cst_33 = arith.constant -1.000000e+01 : f32
    %cst_34 = arith.constant 1.000000e+01 : f32
    %107 = vector.broadcast %cst_33 : f32 to vector<9x16xf32>
    %108 = arith.maximumf %107, %106 : vector<9x16xf32>
    %109 = vector.broadcast %cst_34 : f32 to vector<9x16xf32>
    %110 = arith.minimumf %109, %108 : vector<9x16xf32>
    %111 = vector.extract_strided_slice %7 {offsets = [0, 3], sizes = [9, 1], strides = [1, 1]} : vector<9x5xf32> to vector<9x1xf32>
    %cst_35 = arith.constant 5.000000e-01 : f32
    %112 = vector.broadcast %cst_35 : f32 to vector<9x16xf32>
    %113 = arith.mulf %112, %110 : vector<9x16xf32>
    %114 = math.tanh %113 : vector<9x16xf32>
    %cst_36 = arith.constant 1.000000e+00 : f32
    %115 = vector.broadcast %cst_36 : f32 to vector<9x16xf32>
    %116 = arith.addf %115, %114 : vector<9x16xf32>
    %cst_37 = arith.constant 5.000000e-01 : f32
    %117 = vector.broadcast %cst_37 : f32 to vector<9x16xf32>
    %118 = arith.mulf %117, %116 : vector<9x16xf32>
    %119 = arith.mulf %110, %118 : vector<9x16xf32>
    %120 = vector.broadcast %111 : vector<9x1xf32> to vector<9x16xf32>
    %121 = arith.mulf %120, %119 : vector<9x16xf32>
    %122 = arith.cmpf one, %121, %121 : vector<9x16xf32>
    %cst_38 = arith.constant 0.000000e+00 : f32
    %123 = vector.broadcast %cst_38 : f32 to vector<9x16xf32>
    %124 = arith.select %122, %123, %121 : vector<9x16xi1>, vector<9x16xf32>
    %cst_39 = arith.constant 0x7F800000 : f32
    %125 = vector.broadcast %cst_39 : f32 to vector<9x16xf32>
    %126 = arith.cmpf oeq, %124, %125 : vector<9x16xf32>
    %cst_40 = arith.constant 1.000000e+04 : f32
    %127 = vector.broadcast %cst_40 : f32 to vector<9x16xf32>
    %128 = arith.select %126, %127, %124 : vector<9x16xi1>, vector<9x16xf32>
    %cst_41 = arith.constant 0xFF800000 : f32
    %129 = vector.broadcast %cst_41 : f32 to vector<9x16xf32>
    %130 = arith.cmpf oeq, %128, %129 : vector<9x16xf32>
    %cst_42 = arith.constant -1.000000e+04 : f32
    %131 = vector.broadcast %cst_42 : f32 to vector<9x16xf32>
    %132 = arith.select %130, %131, %128 : vector<9x16xi1>, vector<9x16xf32>
    %133 = arith.addf %103, %132 : vector<9x16xf32>
    %134 = vector.extract_strided_slice %8 {offsets = [0, 4], sizes = [9, 1], strides = [1, 1]} : vector<9x5xf32> to vector<9x1xf32>
    %135 = vector.broadcast %134 : vector<9x1xf32> to vector<9x16xf32>
    %136 = arith.mulf %33, %135 : vector<9x16xf32>
    %cst_43 = arith.constant -1.000000e+01 : f32
    %cst_44 = arith.constant 1.000000e+01 : f32
    %137 = vector.broadcast %cst_43 : f32 to vector<9x16xf32>
    %138 = arith.maximumf %137, %136 : vector<9x16xf32>
    %139 = vector.broadcast %cst_44 : f32 to vector<9x16xf32>
    %140 = arith.minimumf %139, %138 : vector<9x16xf32>
    %141 = vector.extract_strided_slice %7 {offsets = [0, 4], sizes = [9, 1], strides = [1, 1]} : vector<9x5xf32> to vector<9x1xf32>
    %cst_45 = arith.constant 0.000000e+00 : f32
    %cst_46 = arith.constant 6.000000e+00 : f32
    %142 = vector.broadcast %cst_45 : f32 to vector<9x16xf32>
    %143 = arith.maximumf %142, %140 : vector<9x16xf32>
    %144 = vector.broadcast %cst_46 : f32 to vector<9x16xf32>
    %145 = arith.minimumf %144, %143 : vector<9x16xf32>
    %146 = vector.broadcast %141 : vector<9x1xf32> to vector<9x16xf32>
    %147 = arith.mulf %146, %145 : vector<9x16xf32>
    %148 = arith.cmpf one, %147, %147 : vector<9x16xf32>
    %cst_47 = arith.constant 0.000000e+00 : f32
    %149 = vector.broadcast %cst_47 : f32 to vector<9x16xf32>
    %150 = arith.select %148, %149, %147 : vector<9x16xi1>, vector<9x16xf32>
    %cst_48 = arith.constant 0x7F800000 : f32
    %151 = vector.broadcast %cst_48 : f32 to vector<9x16xf32>
    %152 = arith.cmpf oeq, %150, %151 : vector<9x16xf32>
    %cst_49 = arith.constant 1.000000e+04 : f32
    %153 = vector.broadcast %cst_49 : f32 to vector<9x16xf32>
    %154 = arith.select %152, %153, %150 : vector<9x16xi1>, vector<9x16xf32>
    %cst_50 = arith.constant 0xFF800000 : f32
    %155 = vector.broadcast %cst_50 : f32 to vector<9x16xf32>
    %156 = arith.cmpf oeq, %154, %155 : vector<9x16xf32>
    %cst_51 = arith.constant -1.000000e+04 : f32
    %157 = vector.broadcast %cst_51 : f32 to vector<9x16xf32>
    %158 = arith.select %156, %157, %154 : vector<9x16xi1>, vector<9x16xf32>
    %159 = arith.addf %133, %158 : vector<9x16xf32>
    %160 = vector.extract_strided_slice %2 {offsets = [0, 0], sizes = [8, 9], strides = [1, 1]} : vector<8x10xf32> to vector<8x9xf32>
    %cst_52 = arith.constant dense<0.000000e+00> : vector<8x16xf32>
    %161 = tpu.matmul %160, %159, %cst_52 {dimension_numbers = #tpu.dot_dimension_numbers<[1], [0], [0], [1], [0, 0, 1, 1], [], []>} : vector<8x9xf32>, vector<9x16xf32>, vector<8x16xf32> -> vector<8x16xf32>
    %162 = vector.extract_strided_slice %2 {offsets = [0, 9], sizes = [8, 1], strides = [1, 1]} : vector<8x10xf32> to vector<8x1xf32>
    %163 = vector.broadcast %162 : vector<8x1xf32> to vector<8x16xf32>
    %164 = arith.addf %161, %163 : vector<8x16xf32>
    %cst_53 = arith.constant -1.000000e+02 : f32
    %cst_54 = arith.constant 1.000000e+02 : f32
    %165 = vector.broadcast %cst_53 : f32 to vector<8x16xf32>
    %166 = arith.maximumf %165, %164 : vector<8x16xf32>
    %167 = vector.broadcast %cst_54 : f32 to vector<8x16xf32>
    %168 = arith.minimumf %167, %166 : vector<8x16xf32>
    %c0_55 = arith.constant 0 : index
    %c0_56 = arith.constant 0 : index
    %169 = vector.load %arg3[%c0_55, %c0_56] : memref<8x16xf32, #tpu.memory_space<vmem>>, vector<8x16xf32>
    tpu.vector_store %arg3[%c0_55, %c0_56], %168 {strides = array<i32>} : memref<8x16xf32, #tpu.memory_space<vmem>>, vector<8x16xf32>,
    return
  }
}

</mosaic_0001>

<llo_original>
// kernel: tpu_custom_call.1
$region0: #{tpu_custom_call.1}
  #allocation0 [shape = 'u32[]', space=smem, size = 0x4, offset = 0x4, fixed_abs, tag = 'smem constant byte address 0x4 - core index']
  #allocation1 [shape = 'u32[72,128]{1,0:T(1,128)}', space=vmem, size = 0x9000, scoped, tag = 'internal scratch']
  %s0 = inlined_call_operand.hbm [shape: f32[16,16], index: 0, kind: input, shape index: {}]
  %s1 = inlined_call_operand.hbm [shape: f32[9,29], index: 1, kind: input, shape index: {}]
  %s2 = inlined_call_operand.hbm [shape: f32[8,10], index: 2, kind: input, shape index: {}]
  %s3 = inlined_call_operand.hbm [shape: f32[8,16], index: 3, kind: output, shape index: {}]
  %s4 = sld [smem:[#allocation0]]
  $region34: #{tpu_custom_call.1} parent=0
    _
  %s6 = ssub.s32 1, %s4
  %s7 = scalar_select 0, %s6, %s4
  $region1: #{tpu_custom_call.1} parent=0
    #allocation2 [shape = 'u8[8192]{0}', space=vmem, size = 0x2000, scoped, tag = 'input window, operand 0, single buffered']
    #allocation3 [shape = 's32[1]{0}', space=sflag, size = 0x4, scoped, tag = 'scoped memory for tpu_custom_call.1']
    #allocation4 [shape = 's32[1]{0}', space=sflag, size = 0x4, scoped, tag = 'scoped memory for tpu_custom_call.1']
    #allocation5 [shape = 'u8[8192]{0}', space=vmem, size = 0x2000, scoped, tag = 'input window, operand 1, single buffered']
    #allocation6 [shape = 's32[1]{0}', space=sflag, size = 0x4, scoped, tag = 'scoped memory for tpu_custom_call.1']
    #allocation7 [shape = 'u8[4096]{0}', space=vmem, size = 0x1000, scoped, tag = 'input window, operand 2, single buffered']
    #allocation8 [shape = 'u8[4096]{0}', space=vmem, size = 0x1000, scoped, tag = 'output window, operand 0, single buffered']
    %8 = vsyncpa [#allocation3], 0
    %9 = vsyncpa [#allocation6], 0
    %10 = vsyncpa [#allocation4], 0
    // Predicated region
    $region2: #{tpu_custom_call.1} parent=1 // pred_check
      _
    $region3: #{tpu_custom_call.1} parent=1 // pred_check_branch
      %12 = sbr.rel (0) target = $region5
    $region4: #{tpu_custom_call.1} parent=1 // pred_region
      %14 = vsyncadd [#allocation3], 0
      %s15 = sshll.u32 %s0, 4
      %s16 = int_to_ptr.hbm [resolvable:$true] %s15
      %s17 = sshll.u32 [#allocation2], 4
      %s18 = int_to_ptr.vmem [resolvable:$true] %s17
      %23 = dma.hbm_to_vmem [thread:$0]  %s16, 256, %s18, [#allocation3], 128, 128, 8
    $region5: #{tpu_custom_call.1} parent=1 // pred_fallthru
      _
    // Predicated region
    $region6: #{tpu_custom_call.1} parent=1 // pred_check
      _
    $region7: #{tpu_custom_call.1} parent=1 // pred_check_branch
      %25 = sbr.rel (0) target = $region9
    $region8: #{tpu_custom_call.1} parent=1 // pred_region
      %27 = vsyncadd [#allocation6], 0
      %s28 = sshll.u32 %s1, 4
      %s29 = int_to_ptr.hbm [resolvable:$true] %s28
      %s30 = sshll.u32 [#allocation5], 4
      %s31 = int_to_ptr.vmem [resolvable:$true] %s30
      %36 = dma.hbm_to_vmem [thread:$0]  %s29, 256, %s31, [#allocation6], 128, 128, 8
    $region9: #{tpu_custom_call.1} parent=1 // pred_fallthru
      _
    // Predicated region
    $region10: #{tpu_custom_call.1} parent=1 // pred_check
      _
    $region11: #{tpu_custom_call.1} parent=1 // pred_check_branch
      %38 = sbr.rel (0) target = $region13
    $region12: #{tpu_custom_call.1} parent=1 // pred_region
      %40 = vsyncadd [#allocation6], 0
      %s42 = sshll.u32 %s2, 4
      %s43 = int_to_ptr.hbm [resolvable:$true] %s42
      %s44 = sshll.u32 [#allocation7], 4
      %s45 = int_to_ptr.vmem [resolvable:$true] %s44
      %47 = dma.hbm_to_vmem [thread:$0]  %s43, 128, %s45, [#allocation6]
    $region13: #{tpu_custom_call.1} parent=1 // pred_fallthru
      _
    // Predicated region
    $region14: #{tpu_custom_call.1} parent=1 // pred_check
      _
    $region15: #{tpu_custom_call.1} parent=1 // pred_check_branch
      %49 = sbr.rel (0) target = $region17
    $region16: #{tpu_custom_call.1} parent=1 // pred_region
      %51 = dma.done [#allocation3], 256
    $region17: #{tpu_custom_call.1} parent=1 // pred_fallthru
      _
    // Predicated region
    $region18: #{tpu_custom_call.1} parent=1 // pred_check
      _
    $region19: #{tpu_custom_call.1} parent=1 // pred_check_branch
      %53 = sbr.rel (0) target = $region21
    $region20: #{tpu_custom_call.1} parent=1 // pred_region
      %55 = dma.done [#allocation6], 256
    $region21: #{tpu_custom_call.1} parent=1 // pred_fallthru
      _
    // Predicated region
    $region22: #{tpu_custom_call.1} parent=1 // pred_check
      _
    $region23: #{tpu_custom_call.1} parent=1 // pred_check_branch
      %57 = sbr.rel (0) target = $region25
    $region24: #{tpu_custom_call.1} parent=1 // pred_region
      %59 = dma.done [#allocation6], 128
    $region25: #{tpu_custom_call.1} parent=1 // pred_fallthru
      _
    %v60 = vld [vmem:[#allocation2] sm:$0xff]
    %v61 = vld [vmem:[#allocation2 + $0x8] sm:$0xff]
    %v62 = vld [vmem:[#allocation5] sm:$0xff]
    %v63 = vld [vmem:[#allocation5 + $0x8] sm:$0x1]
    %v64 = vld [vmem:[#allocation7] sm:$0xff]
    %66 = vset.pattern.permute.xlu0 16
    %67 = vperm.xlu0 %66, %v62
    %v68 = vpop.permute.xlu0 %67
    %71 = vset.pattern.permute.xlu0 16
    %72 = vperm.xlu0 %71, %v63
    %v73 = vpop.permute.xlu0 %72
    %vm75 = vcmask 130048
    %v76 = vsel %vm75, %v62, 0
    %v78 = vsel %vm75, %v63, 0
    %v81 = vsel %vm75, %v60, 0
    %v84 = vsel %vm75, %v61, 0
    %86 = vmatpush.xpose.msra.mxu0 0.0
    %87 = vmatpush.xpose.msra.mxu0 0.0
    %88 = vmatpush.xpose.msra.mxu0 0.0
    %89 = vmatpush.xpose.msra.mxu0 0.0
    %90 = vmatpush.xpose.msra.mxu0 0.0
    %91 = vmatpush.xpose.msra.mxu0 0.0
    %92 = vmatpush.xpose.msra.mxu0 0.0
    %93 = vmatpush.xpose.msra.mxu0 0.0
    %94 = vmatpush.xpose.msra.mxu0 0.0
    %95 = vmatpush.xpose.msra.mxu0 0.0
    %96 = vmatpush.xpose.msra.mxu0 0.0
    %97 = vmatpush.xpose.msra.mxu0 0.0
    %98 = vmatpush.xpose.msra.mxu0 0.0
    %99 = vmatpush.xpose.msra.mxu0 0.0
    %100 = vmatpush.xpose.msra.mxu0 %v84
    %101 = vmatpush.xpose.msra.mxu0 %v81
    %102 = vmatmul.f32.gmra.mxu0 %v76
    %v103 = vpop.f32.mrf.mxu0
    %v104 = vadd.f32 %v68, %v103
    %105 = vmatmul.f32.gmra.mxu0 %v78
    %v106 = vpop.f32.mrf.mxu0
    %v107 = vadd.f32 %v73, %v106
    %108 = vdwg.mxu0
    %v109 = vsel %vm75, %v104, 0.0
    %vm110 = vcmask 122880
    %v111 = vsel %vm110, %v107, 0.0
    %v112 = vadd.f32 %v109, %v111
    %v113 = vrot.slane %v112, 4
    %v114 = vadd.f32 %v112, %v113
    %v115 = vrot.slane %v114, 2
    %v116 = vadd.f32 %v114, %v115
    %v117 = vrot.slane %v116, 1
    %v118 = vadd.f32 %v116, %v117
    %v119 = vrcp.pop 9.0
    %v120 = vmul.f32 9.0, %v119
    %v121 = vsub.f32 1.0, %v120
    %v122 = vmul.f32 %v119, %v121
    %v123 = vadd.f32 %v119, %v122
    %vm124 = vweird.f32 %v119
    %v125 = vsel %vm124, %v119, %v123
    %v126 = vmul.f32 %v118, %v125
    %v127 = vsub.f32 %v104, %v126
    %v128 = vsub.f32 %v107, %v126
    %v129 = vmul.f32 %v127, %v127
    %v130 = vmul.f32 %v128, %v128
    %v131 = vsel %vm75, %v129, 0.0
    %v132 = vsel %vm110, %v130, 0.0
    %v133 = vadd.f32 %v131, %v132
    %v134 = vrot.slane %v133, 4
    %v135 = vadd.f32 %v133, %v134
    %v136 = vrot.slane %v135, 2
    %v137 = vadd.f32 %v135, %v136
    %v138 = vrot.slane %v137, 1
    %v139 = vadd.f32 %v137, %v138
    %v140 = vmul.f32 %v139, %v125
    %v141 = vadd.f32 %v140, 1e-05
    %v142 = vrsqrt.pop %v141
    %v143 = vmul.f32 %v142, %v141
    %v144 = vmul.f32 %v143, %v142
    %v145 = vmul.f32 0.5, %v144
    %v146 = vsub.f32 1.5, %v145
    %v147 = vmul.f32 %v142, %v146
    %vm148 = vweird.f32 %v141
    %vm149 = vweird.f32 %v142
    %vm150 = vmor %vm148, %vm149
    %v151 = vsel %vm150, %v142, %v147
    %v152 = vmul.f32 %v127, %v151
    %v153 = vmul.f32 %v128, %v151
    %154 = vset.pattern.permute.xlu0 17
    %155 = vperm.xlu0 %154, %v62
    %v156 = vpop.permute.xlu0 %155
    %158 = vset.pattern.permute.xlu0 17
    %159 = vperm.xlu0 %158, %v63
    %v160 = vpop.permute.xlu0 %159
    %v162 = vmul.f32 %v152, %v156
    %v163 = vmul.f32 %v153, %v160
    %164 = vset.pattern.permute.xlu0 18
    %165 = vperm.xlu0 %164, %v62
    %v166 = vpop.permute.xlu0 %165
    %168 = vset.pattern.permute.xlu0 18
    %169 = vperm.xlu0 %168, %v63
    %v170 = vpop.permute.xlu0 %169
    %v172 = vadd.f32 %v162, %v166
    %v173 = vadd.f32 %v163, %v170
    %v174 = vmax.f32 %v172, 0.0
    %v175 = vmax.f32 %v173, 0.0
    %176 = vset.pattern.permute.xlu0 24
    %177 = vperm.xlu0 %176, %v62
    %v178 = vpop.permute.xlu0 %177
    %180 = vset.pattern.permute.xlu0 24
    %181 = vperm.xlu0 %180, %v63
    %v182 = vpop.permute.xlu0 %181
    %v184 = vmul.f32 %v174, %v178
    %v185 = vmul.f32 %v175, %v182
    %v186 = vmax.f32 %v184, -10.0
    %v187 = vmax.f32 %v185, -10.0
    %v188 = vmin.f32 %v186, 10.0
    %v189 = vmin.f32 %v187, 10.0
    %v190 = vand.u32 2147483647, %v188
    %vm191 = vcmp.le.f32.partialorder %v190, 0.7853982
    %vm192 = vcmp.lt.s32.totalorder %v188, 0
    %v193 = vand.u32 %v188, 2139095040
    %v194 = vshrl.u32 %v193, 23
    %v195 = vsub.s32 %v194, 127
    %v196 = vand.u32 2147483647, %v188
    %v197 = vand.u32 %v196, 8388607
    %v198 = vor.u32 %v197, 8388608
    %v199 = vsub.s32 0, %v198
    %v200 = vadd.s32 %v195, 1
    %vm201 = vcmp.gt.s32.totalorder %v200, 0
    %v202 = vsel %vm201, %v200, 0
    %v203 = vshrl.u32 %v202, 5
    %v204 = vand.u32 %v202, 31
    %v205 = vsub.s32 32, %v204
    %v206 = vshrl.u32 683565275, %v205
    %v207 = vshll.u32 683565275, %v204
    %v208 = vshrl.u32 2475754826, %v205
    %v209 = vor.u32 %v207, %v208
    %v210 = vshll.u32 2475754826, %v204
    %v211 = vshrl.u32 2131351028, %v205
    %v212 = vor.u32 %v210, %v211
    %v213 = vshll.u32 2131351028, %v204
    %v214 = vshrl.u32 2102212464, %v205
    %v215 = vor.u32 %v213, %v214
    %v216 = vshll.u32 2102212464, %v204
    %v217 = vshrl.u32 920167782, %v205
    %v218 = vor.u32 %v216, %v217
    %v219 = vshll.u32 920167782, %v204
    %v220 = vshrl.u32 1326507024, %v205
    %v221 = vor.u32 %v219, %v220
    %vm222 = vcmp.lt.s32.totalorder %v203, 1
    %vm223 = vcmp.lt.s32.totalorder %v203, 2
    %vm224 = vcmp.lt.s32.totalorder %v203, 3
    %vm225 = vcmp.lt.s32.totalorder %v203, 4
    %v226 = vsel %vm222, %v206, %v209
    %v227 = vsel %vm225, %v215, 2102212464
    %v228 = vsel %vm224, %v212, %v227
    %v229 = vsel %vm223, %v226, %v228
    %v230 = vsel %vm222, %v209, %v212
    %v231 = vsel %vm225, %v218, 920167782
    %v232 = vsel %vm224, %v215, %v231
    %v233 = vsel %vm223, %v230, %v232
    %v234 = vsel %vm222, %v212, %v215
    %v235 = vsel %vm225, %v221, 1326507024
    %v236 = vsel %vm224, %v218, %v235
    %v237 = vsel %vm223, %v234, %v236
    %v238 = vshll.u32 %v198, 8
    %v239 = vand.u32 %v238, 65535
    %v240 = vshrl.u32 %v238, 16
    %v241 = vand.u32 %v237, 65535
    %v242 = vshrl.u32 %v237, 16
    %v243 = vmul.u32 %v239, %v241
    %v244 = vmul.u32 %v239, %v242
    %v245 = vmul.u32 %v240, %v241
    %v246 = vmul.u32 %v240, %v242
    %v247 = vshll.u32 %v244, 16
    %v248 = vshrl.u32 %v244, 16
    %v249 = vshll.u32 %v245, 16
    %v250 = vshrl.u32 %v245, 16
    %vm251 = vc.u32 %v243, %v247
    %v252 = vsel %vm251, 1, 0
    %v253 = vadd.s32 %v243, %v247
    %v254 = vadd.s32 %v246, %v252
    %vm255 = vc.u32 %v253, %v249
    %v256 = vsel %vm255, 1, 0
    %v257 = vadd.s32 %v253, %v249
    %v258 = vadd.s32 %v254, %v256
    %v259 = vadd.s32 %v258, %v248
    %v260 = vadd.s32 %v259, %v250
    %v261 = vand.u32 %v238, 65535
    %v262 = vshrl.u32 %v238, 16
    %v263 = vand.u32 %v233, 65535
    %v264 = vshrl.u32 %v233, 16
    %v265 = vmul.u32 %v261, %v263
    %v266 = vmul.u32 %v261, %v264
    %v267 = vmul.u32 %v262, %v263
    %v268 = vmul.u32 %v262, %v264
    %v269 = vshll.u32 %v266, 16
    %v270 = vshrl.u32 %v266, 16
    %v271 = vshll.u32 %v267, 16
    %v272 = vshrl.u32 %v267, 16
    %vm273 = vc.u32 %v265, %v269
    %v274 = vsel %vm273, 1, 0
    %v275 = vadd.s32 %v265, %v269
    %v276 = vadd.s32 %v268, %v274
    %vm277 = vc.u32 %v275, %v271
    %v278 = vsel %vm277, 1, 0
    %v279 = vadd.s32 %v275, %v271
    %v280 = vadd.s32 %v276, %v278
    %v281 = vadd.s32 %v280, %v270
    %v282 = vadd.s32 %v281, %v272
    %v283 = vmul.u32 %v238, %v229
    %v284 = vadd.s32 %v260, %v279
    %vm285 = vc.u32 %v260, %v279
    %v286 = vadd.s32 %v282, 1
    %v287 = vsel %vm285, %v286, %v282
    %v288 = vadd.s32 %v283, %v287
    %v289 = vadd.s32 %v288, 536870912
    %v290 = vshrl.u32 %v289, 30
    %v291 = vshll.u32 %v290, 30
    %v292 = vsub.s32 %v288, %v291
    %vm293 = vcmp.lt.s32.totalorder %v292, 0
    %v294 = vsub.s32 0, %v292
    %v295 = vsel %vm293, %v294, %v292
    %v296 = vclz %v295
    %v297 = vsub.s32 %v296, 2
    %vm298 = vcmp.gt.s32.totalorder 0, %v297
    %v299 = vsel %vm298, 0, %v297
    %v300 = vsub.s32 32, %v299
    %v301 = vshll.u32 %v292, %v299
    %v302 = vshrl.u32 %v284, %v300
    %v303 = vor.u32 %v301, %v302
    %v304 = vsub.s32 4294967266, %v299
    %v305 = vadd.s32 %v304, 127
    %v306 = vshll.u32 %v305, 23
    %v307 = vor.u32 4788187, %v306
    %v308 = vand.u32 2147483647, %v307
    %v310 = vcvt.s32.f32 %v303
    %v311 = vmul.f32 %v310, %v308
    %v312 = vxor.u32 %v311, 2147483648
    %v313 = vsel %vm192, %v312, %v311
    %v314 = vsub.s32 4, %v290
    %v315 = vsel %vm192, %v314, %v290
    %v316 = vsel %vm191, %v188, %v313
    %v317 = vsel %vm191, 0, %v315
    %v318 = vmul.f32 %v316, %v316
    %v319 = vmul.f32 %v318, -0.001358992
    %v320 = vadd.f32 %v319, 0.041655596
    %v321 = vmul.f32 %v318, %v320
    %v322 = vadd.f32 %v321, -0.4999988
    %v323 = vmul.f32 %v318, %v322
    %v324 = vadd.f32 1.0, %v323
    %v325 = vmul.f32 %v316, %v316
    %v326 = vmul.f32 %v325, -0.00019511016
    %v327 = vadd.f32 %v326, 0.008332121
    %v328 = vmul.f32 %v325, %v327
    %v329 = vadd.f32 %v328, -0.16666654
    %v330 = vmul.f32 %v325, %v329
    %v331 = vadd.f32 %v330, 1.0
    %v332 = vmul.f32 %v331, %v316
    %vm333 = vweird.f32 %v188
    %v334 = vadd.s32 %v317, 3
    %v335 = vand.u32 %v334, 3
    %vm336 = vcmp.lt.s32.totalorder %v335, 2
    %vm337 = vcmp.eq.s32.totalorder %v335, 0
    %v338 = vxor.u32 %v332, 2147483648
    %v339 = vsel %vm337, %v324, %v338
    %vm340 = vcmp.eq.s32.totalorder %v335, 2
    %v341 = vxor.u32 %v324, 2147483648
    %v342 = vsel %vm340, %v341, %v332
    %v343 = vsel %vm336, %v339, %v342
    %v344 = vsel %vm333, nan, %v343
    %v345 = vand.u32 2147483647, %v189
    %vm346 = vcmp.le.f32.partialorder %v345, 0.7853982
    %vm347 = vcmp.lt.s32.totalorder %v189, 0
    %v348 = vand.u32 %v189, 2139095040
    %v349 = vshrl.u32 %v348, 23
    %v350 = vsub.s32 %v349, 127
    %v351 = vand.u32 2147483647, %v189
    %v352 = vand.u32 %v351, 8388607
    %v353 = vor.u32 %v352, 8388608
    %v354 = vsub.s32 0, %v353
    %v355 = vadd.s32 %v350, 1
    %vm356 = vcmp.gt.s32.totalorder %v355, 0
    %v357 = vsel %vm356, %v355, 0
    %v358 = vshrl.u32 %v357, 5
    %v359 = vand.u32 %v357, 31
    %v360 = vsub.s32 32, %v359
    %v361 = vshrl.u32 683565275, %v360
    %v362 = vshll.u32 683565275, %v359
    %v363 = vshrl.u32 2475754826, %v360
    %v364 = vor.u32 %v362, %v363
    %v365 = vshll.u32 2475754826, %v359
    %v366 = vshrl.u32 2131351028, %v360
    %v367 = vor.u32 %v365, %v366
    %v368 = vshll.u32 2131351028, %v359
    %v369 = vshrl.u32 2102212464, %v360
    %v370 = vor.u32 %v368, %v369
    %v371 = vshll.u32 2102212464, %v359
    %v372 = vshrl.u32 920167782, %v360
    %v373 = vor.u32 %v371, %v372
    %v374 = vshll.u32 920167782, %v359
    %v375 = vshrl.u32 1326507024, %v360
    %v376 = vor.u32 %v374, %v375
    %vm377 = vcmp.lt.s32.totalorder %v358, 1
    %vm378 = vcmp.lt.s32.totalorder %v358, 2
    %vm379 = vcmp.lt.s32.totalorder %v358, 3
    %vm380 = vcmp.lt.s32.totalorder %v358, 4
    %v381 = vsel %vm377, %v361, %v364
    %v382 = vsel %vm380, %v370, 2102212464
    %v383 = vsel %vm379, %v367, %v382
    %v384 = vsel %vm378, %v381, %v383
    %v385 = vsel %vm377, %v364, %v367
    %v386 = vsel %vm380, %v373, 920167782
    %v387 = vsel %vm379, %v370, %v386
    %v388 = vsel %vm378, %v385, %v387
    %v389 = vsel %vm377, %v367, %v370
    %v390 = vsel %vm380, %v376, 1326507024
    %v391 = vsel %vm379, %v373, %v390
    %v392 = vsel %vm378, %v389, %v391
    %v393 = vshll.u32 %v353, 8
    %v394 = vand.u32 %v393, 65535
    %v395 = vshrl.u32 %v393, 16
    %v396 = vand.u32 %v392, 65535
    %v397 = vshrl.u32 %v392, 16
    %v398 = vmul.u32 %v394, %v396
    %v399 = vmul.u32 %v394, %v397
    %v400 = vmul.u32 %v395, %v396
    %v401 = vmul.u32 %v395, %v397
    %v402 = vshll.u32 %v399, 16
    %v403 = vshrl.u32 %v399, 16
    %v404 = vshll.u32 %v400, 16
    %v405 = vshrl.u32 %v400, 16
    %vm406 = vc.u32 %v398, %v402
    %v407 = vsel %vm406, 1, 0
    %v408 = vadd.s32 %v398, %v402
    %v409 = vadd.s32 %v401, %v407
    %vm410 = vc.u32 %v408, %v404
    %v411 = vsel %vm410, 1, 0
    %v412 = vadd.s32 %v408, %v404
    %v413 = vadd.s32 %v409, %v411
    %v414 = vadd.s32 %v413, %v403
    %v415 = vadd.s32 %v414, %v405
    %v416 = vand.u32 %v393, 65535
    %v417 = vshrl.u32 %v393, 16
    %v418 = vand.u32 %v388, 65535
    %v419 = vshrl.u32 %v388, 16
    %v420 = vmul.u32 %v416, %v418
    %v421 = vmul.u32 %v416, %v419
    %v422 = vmul.u32 %v417, %v418
    %v423 = vmul.u32 %v417, %v419
    %v424 = vshll.u32 %v421, 16
    %v425 = vshrl.u32 %v421, 16
    %v426 = vshll.u32 %v422, 16
    %v427 = vshrl.u32 %v422, 16
    %vm428 = vc.u32 %v420, %v424
    %v429 = vsel %vm428, 1, 0
    %v430 = vadd.s32 %v420, %v424
    %v431 = vadd.s32 %v423, %v429
    %vm432 = vc.u32 %v430, %v426
    %v433 = vsel %vm432, 1, 0
    %v434 = vadd.s32 %v430, %v426
    %v435 = vadd.s32 %v431, %v433
    %v436 = vadd.s32 %v435, %v425
    %v437 = vadd.s32 %v436, %v427
    %v438 = vmul.u32 %v393, %v384
    %v439 = vadd.s32 %v415, %v434
    %vm440 = vc.u32 %v415, %v434
    %v441 = vadd.s32 %v437, 1
    %v442 = vsel %vm440, %v441, %v437
    %v443 = vadd.s32 %v438, %v442
    %v444 = vadd.s32 %v443, 536870912
    %v445 = vshrl.u32 %v444, 30
    %v446 = vshll.u32 %v445, 30
    %v447 = vsub.s32 %v443, %v446
    %vm448 = vcmp.lt.s32.totalorder %v447, 0
    %v449 = vsub.s32 0, %v447
    %v450 = vsel %vm448, %v449, %v447
    %v451 = vclz %v450
    %v452 = vsub.s32 %v451, 2
    %vm453 = vcmp.gt.s32.totalorder 0, %v452
    %v454 = vsel %vm453, 0, %v452
    %v455 = vsub.s32 32, %v454
    %v456 = vshll.u32 %v447, %v454
    %v457 = vshrl.u32 %v439, %v455
    %v458 = vor.u32 %v456, %v457
    %v459 = vsub.s32 4294967266, %v454
    %v460 = vadd.s32 %v459, 127
    %v461 = vshll.u32 %v460, 23
    %v462 = vor.u32 4788187, %v461
    %v463 = vand.u32 2147483647, %v462
    %v465 = vcvt.s32.f32 %v458
    %v466 = vmul.f32 %v465, %v463
    %v467 = vxor.u32 %v466, 2147483648
    %v468 = vsel %vm347, %v467, %v466
    %v469 = vsub.s32 4, %v445
    %v470 = vsel %vm347, %v469, %v445
    %v471 = vsel %vm346, %v189, %v468
    %v472 = vsel %vm346, 0, %v470
    %v473 = vmul.f32 %v471, %v471
    %v474 = vmul.f32 %v473, -0.001358992
    %v475 = vadd.f32 %v474, 0.041655596
    %v476 = vmul.f32 %v473, %v475
    %v477 = vadd.f32 %v476, -0.4999988
    %v478 = vmul.f32 %v473, %v477
    %v479 = vadd.f32 1.0, %v478
    %v480 = vmul.f32 %v471, %v471
    %v481 = vmul.f32 %v480, -0.00019511016
    %v482 = vadd.f32 %v481, 0.008332121
    %v483 = vmul.f32 %v480, %v482
    %v484 = vadd.f32 %v483, -0.16666654
    %v485 = vmul.f32 %v480, %v484
    %v486 = vadd.f32 %v485, 1.0
    %v487 = vmul.f32 %v486, %v471
    %vm488 = vweird.f32 %v189
    %v489 = vadd.s32 %v472, 3
    %v490 = vand.u32 %v489, 3
    %vm491 = vcmp.lt.s32.totalorder %v490, 2
    %vm492 = vcmp.eq.s32.totalorder %v490, 0
    %v493 = vxor.u32 %v487, 2147483648
    %v494 = vsel %vm492, %v479, %v493
    %vm495 = vcmp.eq.s32.totalorder %v490, 2
    %v496 = vxor.u32 %v479, 2147483648
    %v497 = vsel %vm495, %v496, %v487
    %v498 = vsel %vm491, %v494, %v497
    %v499 = vsel %vm488, nan, %v498
    %500 = vset.pattern.permute.xlu0 19
    %501 = vperm.xlu0 %500, %v62
    %v502 = vpop.permute.xlu0 %501
    %504 = vset.pattern.permute.xlu0 19
    %505 = vperm.xlu0 %504, %v63
    %v506 = vpop.permute.xlu0 %505
    %v508 = vmul.f32 %v502, %v344
    %v509 = vmul.f32 %v506, %v499
    %vm510 = vcmp.ne.f32.partialorder %v508, %v508
    %vm511 = vcmp.ne.f32.partialorder %v509, %v509
    %v512 = vsel %vm510, 0.0, %v508
    %v513 = vsel %vm511, 0.0, %v509
    %vm514 = vcmp.eq.f32.partialorder %v512, inf
    %vm515 = vcmp.eq.f32.partialorder %v513, inf
    %v516 = vsel %vm514, 10000.0, %v512
    %v517 = vsel %vm515, 10000.0, %v513
    %vm518 = vcmp.eq.f32.partialorder %v516, -inf
    %vm519 = vcmp.eq.f32.partialorder %v517, -inf
    %v520 = vsel %vm518, -10000.0, %v516
    %v521 = vsel %vm519, -10000.0, %v517
    %v522 = vadd.f32 %v520, 0.0
    %v523 = vadd.f32 %v521, 0.0
    %524 = vset.pattern.permute.xlu0 25
    %525 = vperm.xlu0 %524, %v62
    %v526 = vpop.permute.xlu0 %525
    %528 = vset.pattern.permute.xlu0 25
    %529 = vperm.xlu0 %528, %v63
    %v530 = vpop.permute.xlu0 %529
    %v532 = vmul.f32 %v174, %v526
    %v533 = vmul.f32 %v175, %v530
    %v534 = vmax.f32 %v532, -10.0
    %v535 = vmax.f32 %v533, -10.0
    %v536 = vmin.f32 %v534, 10.0
    %v537 = vmin.f32 %v535, 10.0
    %v538 = vand.u32 2147483647, %v536
    %vm539 = vcmp.le.f32.partialorder %v538, 0.7853982
    %vm540 = vcmp.lt.s32.totalorder %v536, 0
    %v541 = vand.u32 %v536, 2139095040
    %v542 = vshrl.u32 %v541, 23
    %v543 = vsub.s32 %v542, 127
    %v544 = vand.u32 2147483647, %v536
    %v545 = vand.u32 %v544, 8388607
    %v546 = vor.u32 %v545, 8388608
    %v547 = vsub.s32 0, %v546
    %v548 = vadd.s32 %v543, 1
    %vm549 = vcmp.gt.s32.totalorder %v548, 0
    %v550 = vsel %vm549, %v548, 0
    %v551 = vshrl.u32 %v550, 5
    %v552 = vand.u32 %v550, 31
    %v553 = vsub.s32 32, %v552
    %v554 = vshrl.u32 683565275, %v553
    %v555 = vshll.u32 683565275, %v552
    %v556 = vshrl.u32 2475754826, %v553
    %v557 = vor.u32 %v555, %v556
    %v558 = vshll.u32 2475754826, %v552
    %v559 = vshrl.u32 2131351028, %v553
    %v560 = vor.u32 %v558, %v559
    %v561 = vshll.u32 2131351028, %v552
    %v562 = vshrl.u32 2102212464, %v553
    %v563 = vor.u32 %v561, %v562
    %v564 = vshll.u32 2102212464, %v552
    %v565 = vshrl.u32 920167782, %v553
    %v566 = vor.u32 %v564, %v565
    %v567 = vshll.u32 920167782, %v552
    %v568 = vshrl.u32 1326507024, %v553
    %v569 = vor.u32 %v567, %v568
    %vm570 = vcmp.lt.s32.totalorder %v551, 1
    %vm571 = vcmp.lt.s32.totalorder %v551, 2
    %vm572 = vcmp.lt.s32.totalorder %v551, 3
    %vm573 = vcmp.lt.s32.totalorder %v551, 4
    %v574 = vsel %vm570, %v554, %v557
    %v575 = vsel %vm573, %v563, 2102212464
    %v576 = vsel %vm572, %v560, %v575
    %v577 = vsel %vm571, %v574, %v576
    %v578 = vsel %vm570, %v557, %v560
    %v579 = vsel %vm573, %v566, 920167782
    %v580 = vsel %vm572, %v563, %v579
    %v581 = vsel %vm571, %v578, %v580
    %v582 = vsel %vm570, %v560, %v563
    %v583 = vsel %vm573, %v569, 1326507024
    %v584 = vsel %vm572, %v566, %v583
    %v585 = vsel %vm571, %v582, %v584
    %v586 = vshll.u32 %v546, 8
    %v587 = vand.u32 %v586, 65535
    %v588 = vshrl.u32 %v586, 16
    %v589 = vand.u32 %v585, 65535
    %v590 = vshrl.u32 %v585, 16
    %v591 = vmul.u32 %v587, %v589
    %v592 = vmul.u32 %v587, %v590
    %v593 = vmul.u32 %v588, %v589
    %v594 = vmul.u32 %v588, %v590
    %v595 = vshll.u32 %v592, 16
    %v596 = vshrl.u32 %v592, 16
    %v597 = vshll.u32 %v593, 16
    %v598 = vshrl.u32 %v593, 16
    %vm599 = vc.u32 %v591, %v595
    %v600 = vsel %vm599, 1, 0
    %v601 = vadd.s32 %v591, %v595
    %v602 = vadd.s32 %v594, %v600
    %vm603 = vc.u32 %v601, %v597
    %v604 = vsel %vm603, 1, 0
    %v605 = vadd.s32 %v601, %v597
    %v606 = vadd.s32 %v602, %v604
    %v607 = vadd.s32 %v606, %v596
    %v608 = vadd.s32 %v607, %v598
    %v609 = vand.u32 %v586, 65535
    %v610 = vshrl.u32 %v586, 16
    %v611 = vand.u32 %v581, 65535
    %v612 = vshrl.u32 %v581, 16
    %v613 = vmul.u32 %v609, %v611
    %v614 = vmul.u32 %v609, %v612
    %v615 = vmul.u32 %v610, %v611
    %v616 = vmul.u32 %v610, %v612
    %v617 = vshll.u32 %v614, 16
    %v618 = vshrl.u32 %v614, 16
    %v619 = vshll.u32 %v615, 16
    %v620 = vshrl.u32 %v615, 16
    %vm621 = vc.u32 %v613, %v617
    %v622 = vsel %vm621, 1, 0
    %v623 = vadd.s32 %v613, %v617
    %v624 = vadd.s32 %v616, %v622
    %vm625 = vc.u32 %v623, %v619
    %v626 = vsel %vm625, 1, 0
    %v627 = vadd.s32 %v623, %v619
    %v628 = vadd.s32 %v624, %v626
    %v629 = vadd.s32 %v628, %v618
    %v630 = vadd.s32 %v629, %v620
    %v631 = vmul.u32 %v586, %v577
    %v632 = vadd.s32 %v608, %v627
    %vm633 = vc.u32 %v608, %v627
    %v634 = vadd.s32 %v630, 1
    %v635 = vsel %vm633, %v634, %v630
    %v636 = vadd.s32 %v631, %v635
    %v637 = vadd.s32 %v636, 536870912
    %v638 = vshrl.u32 %v637, 30
    %v639 = vshll.u32 %v638, 30
    %v640 = vsub.s32 %v636, %v639
    %vm641 = vcmp.lt.s32.totalorder %v640, 0
    %v642 = vsub.s32 0, %v640
    %v643 = vsel %vm641, %v642, %v640
    %v644 = vclz %v643
    %v645 = vsub.s32 %v644, 2
    %vm646 = vcmp.gt.s32.totalorder 0, %v645
    %v647 = vsel %vm646, 0, %v645
    %v648 = vsub.s32 32, %v647
    %v649 = vshll.u32 %v640, %v647
    %v650 = vshrl.u32 %v632, %v648
    %v651 = vor.u32 %v649, %v650
    %v652 = vsub.s32 4294967266, %v647
    %v653 = vadd.s32 %v652, 127
    %v654 = vshll.u32 %v653, 23
    %v655 = vor.u32 4788187, %v654
    %v656 = vand.u32 2147483647, %v655
    %v658 = vcvt.s32.f32 %v651
    %v659 = vmul.f32 %v658, %v656
    %v660 = vxor.u32 %v659, 2147483648
    %v661 = vsel %vm540, %v660, %v659
    %v662 = vsub.s32 4, %v638
    %v663 = vsel %vm540, %v662, %v638
    %v664 = vsel %vm539, %v536, %v661
    %v665 = vsel %vm539, 0, %v663
    %v666 = vmul.f32 %v664, %v664
    %v667 = vmul.f32 %v666, -0.001358992
    %v668 = vadd.f32 %v667, 0.041655596
    %v669 = vmul.f32 %v666, %v668
    %v670 = vadd.f32 %v669, -0.4999988
    %v671 = vmul.f32 %v666, %v670
    %v672 = vadd.f32 1.0, %v671
    %v673 = vmul.f32 %v664, %v664
    %v674 = vmul.f32 %v673, -0.00019511016
    %v675 = vadd.f32 %v674, 0.008332121
    %v676 = vmul.f32 %v673, %v675
    %v677 = vadd.f32 %v676, -0.16666654
    %v678 = vmul.f32 %v673, %v677
    %v679 = vadd.f32 %v678, 1.0
    %v680 = vmul.f32 %v679, %v664
    %vm681 = vweird.f32 %v536
    %v682 = vand.u32 %v665, 3
    %vm683 = vcmp.lt.s32.totalorder %v682, 2
    %vm684 = vcmp.eq.s32.totalorder %v682, 0
    %v685 = vxor.u32 %v680, 2147483648
    %v686 = vsel %vm684, %v672, %v685
    %vm687 = vcmp.eq.s32.totalorder %v682, 2
    %v688 = vxor.u32 %v672, 2147483648
    %v689 = vsel %vm687, %v688, %v680
    %v690 = vsel %vm683, %v686, %v689
    %v691 = vsel %vm681, nan, %v690
    %v692 = vand.u32 2147483647, %v537
    %vm693 = vcmp.le.f32.partialorder %v692, 0.7853982
    %vm694 = vcmp.lt.s32.totalorder %v537, 0
    %v695 = vand.u32 %v537, 2139095040
    %v696 = vshrl.u32 %v695, 23
    %v697 = vsub.s32 %v696, 127
    %v698 = vand.u32 2147483647, %v537
    %v699 = vand.u32 %v698, 8388607
    %v700 = vor.u32 %v699, 8388608
    %v701 = vsub.s32 0, %v700
    %v702 = vadd.s32 %v697, 1
    %vm703 = vcmp.gt.s32.totalorder %v702, 0
    %v704 = vsel %vm703, %v702, 0
    %v705 = vshrl.u32 %v704, 5
    %v706 = vand.u32 %v704, 31
    %v707 = vsub.s32 32, %v706
    %v708 = vshrl.u32 683565275, %v707
    %v709 = vshll.u32 683565275, %v706
    %v710 = vshrl.u32 2475754826, %v707
    %v711 = vor.u32 %v709, %v710
    %v712 = vshll.u32 2475754826, %v706
    %v713 = vshrl.u32 2131351028, %v707
    %v714 = vor.u32 %v712, %v713
    %v715 = vshll.u32 2131351028, %v706
    %v716 = vshrl.u32 2102212464, %v707
    %v717 = vor.u32 %v715, %v716
    %v718 = vshll.u32 2102212464, %v706
    %v719 = vshrl.u32 920167782, %v707
    %v720 = vor.u32 %v718, %v719
    %v721 = vshll.u32 920167782, %v706
    %v722 = vshrl.u32 1326507024, %v707
    %v723 = vor.u32 %v721, %v722
    %vm724 = vcmp.lt.s32.totalorder %v705, 1
    %vm725 = vcmp.lt.s32.totalorder %v705, 2
    %vm726 = vcmp.lt.s32.totalorder %v705, 3
    %vm727 = vcmp.lt.s32.totalorder %v705, 4
    %v728 = vsel %vm724, %v708, %v711
    %v729 = vsel %vm727, %v717, 2102212464
    %v730 = vsel %vm726, %v714, %v729
    %v731 = vsel %vm725, %v728, %v730
    %v732 = vsel %vm724, %v711, %v714
    %v733 = vsel %vm727, %v720, 920167782
    %v734 = vsel %vm726, %v717, %v733
    %v735 = vsel %vm725, %v732, %v734
    %v736 = vsel %vm724, %v714, %v717
    %v737 = vsel %vm727, %v723, 1326507024
    %v738 = vsel %vm726, %v720, %v737
    %v739 = vsel %vm725, %v736, %v738
    %v740 = vshll.u32 %v700, 8
    %v741 = vand.u32 %v740, 65535
    %v742 = vshrl.u32 %v740, 16
    %v743 = vand.u32 %v739, 65535
    %v744 = vshrl.u32 %v739, 16
    %v745 = vmul.u32 %v741, %v743
    %v746 = vmul.u32 %v741, %v744
    %v747 = vmul.u32 %v742, %v743
    %v748 = vmul.u32 %v742, %v744
    %v749 = vshll.u32 %v746, 16
    %v750 = vshrl.u32 %v746, 16
    %v751 = vshll.u32 %v747, 16
    %v752 = vshrl.u32 %v747, 16
    %vm753 = vc.u32 %v745, %v749
    %v754 = vsel %vm753, 1, 0
    %v755 = vadd.s32 %v745, %v749
    %v756 = vadd.s32 %v748, %v754
    %vm757 = vc.u32 %v755, %v751
    %v758 = vsel %vm757, 1, 0
    %v759 = vadd.s32 %v755, %v751
    %v760 = vadd.s32 %v756, %v758
    %v761 = vadd.s32 %v760, %v750
    %v762 = vadd.s32 %v761, %v752
    %v763 = vand.u32 %v740, 65535
    %v764 = vshrl.u32 %v740, 16
    %v765 = vand.u32 %v735, 65535
    %v766 = vshrl.u32 %v735, 16
    %v767 = vmul.u32 %v763, %v765
    %v768 = vmul.u32 %v763, %v766
    %v769 = vmul.u32 %v764, %v765
    %v770 = vmul.u32 %v764, %v766
    %v771 = vshll.u32 %v768, 16
    %v772 = vshrl.u32 %v768, 16
    %v773 = vshll.u32 %v769, 16
    %v774 = vshrl.u32 %v769, 16
    %vm775 = vc.u32 %v767, %v771
    %v776 = vsel %vm775, 1, 0
    %v777 = vadd.s32 %v767, %v771
    %v778 = vadd.s32 %v770, %v776
    %vm779 = vc.u32 %v777, %v773
    %v780 = vsel %vm779, 1, 0
    %v781 = vadd.s32 %v777, %v773
    %v782 = vadd.s32 %v778, %v780
    %v783 = vadd.s32 %v782, %v772
    %v784 = vadd.s32 %v783, %v774
    %v785 = vmul.u32 %v740, %v731
    %v786 = vadd.s32 %v762, %v781
    %vm787 = vc.u32 %v762, %v781
    %v788 = vadd.s32 %v784, 1
    %v789 = vsel %vm787, %v788, %v784
    %v790 = vadd.s32 %v785, %v789
    %v791 = vadd.s32 %v790, 536870912
    %v792 = vshrl.u32 %v791, 30
    %v793 = vshll.u32 %v792, 30
    %v794 = vsub.s32 %v790, %v793
    %vm795 = vcmp.lt.s32.totalorder %v794, 0
    %v796 = vsub.s32 0, %v794
    %v797 = vsel %vm795, %v796, %v794
    %v798 = vclz %v797
    %v799 = vsub.s32 %v798, 2
    %vm800 = vcmp.gt.s32.totalorder 0, %v799
    %v801 = vsel %vm800, 0, %v799
    %v802 = vsub.s32 32, %v801
    %v803 = vshll.u32 %v794, %v801
    %v804 = vshrl.u32 %v786, %v802
    %v805 = vor.u32 %v803, %v804
    %v806 = vsub.s32 4294967266, %v801
    %v807 = vadd.s32 %v806, 127
    %v808 = vshll.u32 %v807, 23
    %v809 = vor.u32 4788187, %v808
    %v810 = vand.u32 2147483647, %v809
    %v812 = vcvt.s32.f32 %v805
    %v813 = vmul.f32 %v812, %v810
    %v814 = vxor.u32 %v813, 2147483648
    %v815 = vsel %vm694, %v814, %v813
    %v816 = vsub.s32 4, %v792
    %v817 = vsel %vm694, %v816, %v792
    %v818 = vsel %vm693, %v537, %v815
    %v819 = vsel %vm693, 0, %v817
    %v820 = vmul.f32 %v818, %v818
    %v821 = vmul.f32 %v820, -0.001358992
    %v822 = vadd.f32 %v821, 0.041655596
    %v823 = vmul.f32 %v820, %v822
    %v824 = vadd.f32 %v823, -0.4999988
    %v825 = vmul.f32 %v820, %v824
    %v826 = vadd.f32 1.0, %v825
    %v827 = vmul.f32 %v818, %v818
    %v828 = vmul.f32 %v827, -0.00019511016
    %v829 = vadd.f32 %v828, 0.008332121
    %v830 = vmul.f32 %v827, %v829
    %v831 = vadd.f32 %v830, -0.16666654
    %v832 = vmul.f32 %v827, %v831
    %v833 = vadd.f32 %v832, 1.0
    %v834 = vmul.f32 %v833, %v818
    %vm835 = vweird.f32 %v537
    %v836 = vand.u32 %v819, 3
    %vm837 = vcmp.lt.s32.totalorder %v836, 2
    %vm838 = vcmp.eq.s32.totalorder %v836, 0
    %v839 = vxor.u32 %v834, 2147483648
    %v840 = vsel %vm838, %v826, %v839
    %vm841 = vcmp.eq.s32.totalorder %v836, 2
    %v842 = vxor.u32 %v826, 2147483648
    %v843 = vsel %vm841, %v842, %v834
    %v844 = vsel %vm837, %v840, %v843
    %v845 = vsel %vm835, nan, %v844
    %846 = vset.pattern.permute.xlu0 20
    %847 = vperm.xlu0 %846, %v62
    %v848 = vpop.permute.xlu0 %847
    %850 = vset.pattern.permute.xlu0 20
    %851 = vperm.xlu0 %850, %v63
    %v852 = vpop.permute.xlu0 %851
    %v854 = vmul.f32 %v848, %v691
    %v855 = vmul.f32 %v852, %v845
    %vm856 = vcmp.ne.f32.partialorder %v854, %v854
    %vm857 = vcmp.ne.f32.partialorder %v855, %v855
    %v858 = vsel %vm856, 0.0, %v854
    %v859 = vsel %vm857, 0.0, %v855
    %vm860 = vcmp.eq.f32.partialorder %v858, inf
    %vm861 = vcmp.eq.f32.partialorder %v859, inf
    %v862 = vsel %vm860, 10000.0, %v858
    %v863 = vsel %vm861, 10000.0, %v859
    %vm864 = vcmp.eq.f32.partialorder %v862, -inf
    %vm865 = vcmp.eq.f32.partialorder %v863, -inf
    %v866 = vsel %vm864, -10000.0, %v862
    %v867 = vsel %vm865, -10000.0, %v863
    %v868 = vadd.f32 %v522, %v866
    %v869 = vadd.f32 %v523, %v867
    %870 = vset.pattern.permute.xlu0 26
    %871 = vperm.xlu0 %870, %v62
    %v872 = vpop.permute.xlu0 %871
    %874 = vset.pattern.permute.xlu0 26
    %875 = vperm.xlu0 %874, %v63
    %v876 = vpop.permute.xlu0 %875
    %v878 = vmul.f32 %v174, %v872
    %v879 = vmul.f32 %v175, %v876
    %v880 = vmax.f32 %v878, -10.0
    %v881 = vmax.f32 %v879, -10.0
    %v882 = vmin.f32 %v880, 10.0
    %v883 = vmin.f32 %v881, 10.0
    %v884 = vtanh.pop %v882
    %v885 = vtanh.pop %v883
    %886 = vset.pattern.permute.xlu0 21
    %887 = vperm.xlu0 %886, %v62
    %v888 = vpop.permute.xlu0 %887
    %890 = vset.pattern.permute.xlu0 21
    %891 = vperm.xlu0 %890, %v63
    %v892 = vpop.permute.xlu0 %891
    %v894 = vmul.f32 %v888, %v884
    %v895 = vmul.f32 %v892, %v885
    %vm896 = vcmp.ne.f32.partialorder %v894, %v894
    %vm897 = vcmp.ne.f32.partialorder %v895, %v895
    %v898 = vsel %vm896, 0.0, %v894
    %v899 = vsel %vm897, 0.0, %v895
    %vm900 = vcmp.eq.f32.partialorder %v898, inf
    %vm901 = vcmp.eq.f32.partialorder %v899, inf
    %v902 = vsel %vm900, 10000.0, %v898
    %v903 = vsel %vm901, 10000.0, %v899
    %vm904 = vcmp.eq.f32.partialorder %v902, -inf
    %vm905 = vcmp.eq.f32.partialorder %v903, -inf
    %v906 = vsel %vm904, -10000.0, %v902
    %v907 = vsel %vm905, -10000.0, %v903
    %v908 = vadd.f32 %v868, %v906
    %v909 = vadd.f32 %v869, %v907
    %910 = vset.pattern.permute.xlu0 27
    %911 = vperm.xlu0 %910, %v62
    %v912 = vpop.permute.xlu0 %911
    %914 = vset.pattern.permute.xlu0 27
    %915 = vperm.xlu0 %914, %v63
    %v916 = vpop.permute.xlu0 %915
    %v918 = vmul.f32 %v174, %v912
    %v919 = vmul.f32 %v175, %v916
    %v920 = vmax.f32 %v918, -10.0
    %v921 = vmax.f32 %v919, -10.0
    %v922 = vmin.f32 %v920, 10.0
    %v923 = vmin.f32 %v921, 10.0
    %v924 = vmul.f32 %v922, 0.5
    %v925 = vmul.f32 %v923, 0.5
    %v926 = vtanh.pop %v924
    %v927 = vtanh.pop %v925
    %v928 = vadd.f32 %v926, 1.0
    %v929 = vadd.f32 %v927, 1.0
    %v930 = vmul.f32 %v928, 0.5
    %v931 = vmul.f32 %v929, 0.5
    %v932 = vmul.f32 %v922, %v930
    %v933 = vmul.f32 %v923, %v931
    %934 = vset.pattern.permute.xlu0 22
    %935 = vperm.xlu0 %934, %v62
    %v936 = vpop.permute.xlu0 %935
    %938 = vset.pattern.permute.xlu0 22
    %939 = vperm.xlu0 %938, %v63
    %v940 = vpop.permute.xlu0 %939
    %v942 = vmul.f32 %v936, %v932
    %v943 = vmul.f32 %v940, %v933
    %vm944 = vcmp.ne.f32.partialorder %v942, %v942
    %vm945 = vcmp.ne.f32.partialorder %v943, %v943
    %v946 = vsel %vm944, 0.0, %v942
    %v947 = vsel %vm945, 0.0, %v943
    %vm948 = vcmp.eq.f32.partialorder %v946, inf
    %vm949 = vcmp.eq.f32.partialorder %v947, inf
    %v950 = vsel %vm948, 10000.0, %v946
    %v951 = vsel %vm949, 10000.0, %v947
    %vm952 = vcmp.eq.f32.partialorder %v950, -inf
    %vm953 = vcmp.eq.f32.partialorder %v951, -inf
    %v954 = vsel %vm952, -10000.0, %v950
    %v955 = vsel %vm953, -10000.0, %v951
    %v956 = vadd.f32 %v908, %v954
    %v957 = vadd.f32 %v909, %v955
    %958 = vset.pattern.permute.xlu0 28
    %959 = vperm.xlu0 %958, %v62
    %v960 = vpop.permute.xlu0 %959
    %962 = vset.pattern.permute.xlu0 28
    %963 = vperm.xlu0 %962, %v63
    %v964 = vpop.permute.xlu0 %963
    %v966 = vmul.f32 %v174, %v960
    %v967 = vmul.f32 %v175, %v964
    %v968 = vmax.f32 %v966, -10.0
    %v969 = vmax.f32 %v967, -10.0
    %v970 = vmin.f32 %v968, 10.0
    %v971 = vmin.f32 %v969, 10.0
    %v972 = vmax.f32 %v970, 0.0
    %v973 = vmax.f32 %v971, 0.0
    %v974 = vmin.f32 %v972, 6.0
    %v975 = vmin.f32 %v973, 6.0
    %976 = vset.pattern.permute.xlu0 23
    %977 = vperm.xlu0 %976, %v62
    %v978 = vpop.permute.xlu0 %977
    %980 = vset.pattern.permute.xlu0 23
    %981 = vperm.xlu0 %980, %v63
    %v982 = vpop.permute.xlu0 %981
    %v984 = vmul.f32 %v978, %v974
    %v985 = vmul.f32 %v982, %v975
    %vm986 = vcmp.ne.f32.partialorder %v984, %v984
    %vm987 = vcmp.ne.f32.partialorder %v985, %v985
    %v988 = vsel %vm986, 0.0, %v984
    %v989 = vsel %vm987, 0.0, %v985
    %vm990 = vcmp.eq.f32.partialorder %v988, inf
    %vm991 = vcmp.eq.f32.partialorder %v989, inf
    %v992 = vsel %vm990, 10000.0, %v988
    %v993 = vsel %vm991, 10000.0, %v989
    %vm994 = vcmp.eq.f32.partialorder %v992, -inf
    %vm995 = vcmp.eq.f32.partialorder %v993, -inf
    %v996 = vsel %vm994, -10000.0, %v992
    %v997 = vsel %vm995, -10000.0, %v993
    %v998 = vadd.f32 %v956, %v996
    %v999 = vadd.f32 %v957, %v997
    %1001 = vset.pattern.permute.xlu0 9
    %1002 = vperm.xlu0 %1001, %v64
    %v1003 = vpop.permute.xlu0 %1002
    %vm1005 = vcmask 72704
    %v1006 = vsel %vm1005, %v64, 0
    %vm1008 = vcmask 1040384
    %v1010 = vsel %vm1008, %v999, 0
    %1012 = vmatpush.msra.mxu0 0.0
    %1013 = vmatpush.msra.mxu0 0.0
    %1014 = vmatpush.msra.mxu0 0.0
    %1015 = vmatpush.msra.mxu0 0.0
    %1016 = vmatpush.msra.mxu0 0.0
    %1017 = vmatpush.msra.mxu0 0.0
    %1018 = vmatpush.msra.mxu0 0.0
    %1019 = vmatpush.msra.mxu0 0.0
    %1020 = vmatpush.msra.mxu0 0.0
    %1021 = vmatpush.msra.mxu0 0.0
    %1022 = vmatpush.msra.mxu0 0.0
    %1023 = vmatpush.msra.mxu0 0.0
    %1024 = vmatpush.msra.mxu0 0.0
    %1025 = vmatpush.msra.mxu0 0.0
    %1026 = vmatpush.msra.mxu0 %v1010
    %1027 = vmatpush.msra.mxu0 %v998
    %1028 = vmatmul.f32.gmra.mxu0 %v1006
    %v1029 = vpop.f32.mrf.mxu0
    %v1030 = vadd.f32 %v1003, %v1029
    %1031 = vdwg.mxu0
    %v1032 = vmax.f32 %v1030, -100.0
    %v1033 = vmin.f32 %v1032, 100.0
    %1034 = vst.msk [vmem:[#allocation8] sm:$0xff] %vm75, %v1033
    // Predicated region
    $region26: #{tpu_custom_call.1} parent=1 // pred_check
      _
    $region27: #{tpu_custom_call.1} parent=1 // pred_check_branch
      %1036 = sbr.rel (0) target = $region29
    $region28: #{tpu_custom_call.1} parent=1 // pred_region
      %1038 = vsyncadd [#allocation4], 0
      %s1040 = sshll.u32 [#allocation8], 4
      %s1041 = int_to_ptr.vmem [resolvable:$true] %s1040
      %s1042 = sshll.u32 %s3, 4
      %s1043 = int_to_ptr.hbm [resolvable:$true] %s1042
      %1045 = dma.vmem_to_hbm [thread:$0]  %s1041, 128, %s1043, [#allocation4]
    $region29: #{tpu_custom_call.1} parent=1 // pred_fallthru
      _
    // Predicated region
    $region30: #{tpu_custom_call.1} parent=1 // pred_check
      _
    $region31: #{tpu_custom_call.1} parent=1 // pred_check_branch
      %1047 = sbr.rel (0) target = $region33
    $region32: #{tpu_custom_call.1} parent=1 // pred_region
      %1049 = dma.done [#allocation4], 128
    $region33: #{tpu_custom_call.1} parent=1 // pred_fallthru
      _
    %1050 = vsyncpa [#allocation3], 1
    %1051 = vsyncpa [#allocation6], 1
    %1052 = vsyncpa [#allocation4], 1

</llo_original>
